<compile_context>
chip_gen: v5e
topology: v5e:2x2
jax: 0.10.0
libtpu: 0.0.40
codegen_flags: <defaults>
</compile_context>

<pallas_src>
import numpy as np
import jax
import jax.numpy as jnp
from jax.experimental import pallas as pl
from jax.experimental.pallas import tpu as pltpu


# ---------------------------------------------------------------------------
# Host-side filter / operator construction (trace-time, static shapes).
# ---------------------------------------------------------------------------

def _gauss_kernel_1d(size: int, std: float) -> np.ndarray:
    """Replicates gauss_kernel(size, dims=1, std): scipy.ndimage.gaussian_filter
    applied to a 1-D delta (mode='reflect', truncate=4.0), then normalized."""
    radius = int(4.0 * std + 0.5)
    x = np.arange(-radius, radius + 1, dtype=np.float64)
    phi = np.exp(-0.5 / (std * std) * x * x)
    phi = phi / phi.sum()
    delta = np.zeros(size, dtype=np.float64)
    delta[size // 2] = 1.0
    padded = np.pad(delta, radius, mode="symmetric")  # scipy 'reflect' == np 'symmetric'
    out = np.correlate(padded, phi, mode="valid").astype(np.float32)
    return out / out.sum()


def _banded_blur_matrix(n_in: int, kw: int, pad: int, f: np.ndarray) -> np.ndarray:
    """(n_out, n_in) matrix == replicate-pad by `pad` then 'valid' correlation
    with the kw-tap filter f.  Row i accumulates f[k] at clip(i + k - pad)."""
    n_out = n_in + 2 * pad - kw + 1
    m = np.zeros((n_out, n_in), dtype=np.float32)
    for i in range(n_out):
        for k in range(kw):
            j = min(max(i + k - pad, 0), n_in - 1)
            m[i, j] += f[k]
    return m


def _round_up(x: int, m: int) -> int:
    return (x + m - 1) // m * m


def _cdiv(a: int, b: int) -> int:
    return -(-a // b)


# Use the fused Kronecker operator when it stays comfortably inside VMEM.
_KRON_MAX_ELEMS = 2 * 1024 * 1024          # <= 8 MiB f32 operator matrix


def _pick_batch_block(n_imgs: int, per_img_bytes: int, fixed_bytes: int):
    """Images per grid step.

    * multiple of 8 (full sublanes, required by the (8,128) block constraint),
    * sized from an explicit VMEM budget that counts the constant operator
      matrix and the in-kernel f32 intermediates (safe on v7x's 64 MiB/TC),
    * >= 4 grid steps when there is enough work (>= 2 per v7x TensorCore and
      enough steps for DMA/compute software pipelining), preferring an even
      step count so the two v7x cores stay balanced.
    """
    budget = 36 * 1024 * 1024
    avail = max(budget - fixed_bytes, 8 * per_img_bytes)
    cap = max(8, (avail // per_img_bytes) // 8 * 8)
    bp8 = _round_up(n_imgs, 8)
    b_blk = min(cap, bp8)
    if bp8 >= 4 * 8:                                   # enough work for >= 4 steps
        max_steps = bp8 // 8
        steps = _cdiv(bp8, b_blk)
        if steps < 4:
            steps = 4
        if steps % 2:
            steps += 1
        steps = min(steps, max_steps)
        b_blk = min(b_blk, _round_up(_cdiv(bp8, steps), 8))
    b_pad = _round_up(bp8, b_blk)
    return b_blk, b_pad


# ---------------------------------------------------------------------------
# Kernels.
# ---------------------------------------------------------------------------

def _kron_blur_kernel(m_ref, x_ref, o_ref):
    # m_ref: (H*W, OWp)   fused blur operator kron(Bh, Bw)^T (zero-padded cols)
    # x_ref: (b_blk, H*W) flat images        (lane-dense, contiguous DMA)
    # o_ref: (b_blk, OWp) flat blurred out   (lane-dense, unmasked store)
    # One MXU matmul, no reshapes/transposes, operands stay in the input dtype,
    # accumulation in f32.
    o_ref[...] = jnp.dot(
        x_ref[...], m_ref[...], preferred_element_type=jnp.float32
    ).astype(o_ref.dtype)


def _sep_blur_kernel(bh_ref, bwt_ref, x_ref, o_ref):
    # bh_ref : (Ho, H)          banded H-pass matrix (replicate pad folded in)
    # bwt_ref: (W, Wo)          transposed banded W-pass matrix
    # x_ref  : (b_blk, H, W)
    # o_ref  : (b_blk, Ho, Wo)
    B, H, W = x_ref.shape
    Ho = bh_ref.shape[0]
    Wo = bwt_ref.shape[1]
    x = x_ref[...]
    # W pass: one 2-D MXU matmul over all (image, row) pairs; the reshape only
    # merges the two leading (sublane-major) dims.
    t = jnp.dot(x.reshape(B * H, W), bwt_ref[...],
                preferred_element_type=jnp.float32)                  # (B*H, Wo)
    t = t.astype(x.dtype).reshape(B, H, Wo)
    # H pass: batched MXU matmul (Bh broadcast once per kernel trace); no
    # major-axis transposes.
    bh_b = jnp.broadcast_to(bh_ref[...], (B, Ho, H))
    out = jax.lax.dot_general(bh_b, t, (((2,), (1,)), ((0,), (0,))),
                              preferred_element_type=jnp.float32)    # (B, Ho, Wo)
    o_ref[...] = out.astype(o_ref.dtype)


# ---------------------------------------------------------------------------
# Wrapper.
# ---------------------------------------------------------------------------

_COMPILER_PARAMS = pltpu.CompilerParams(
    dimension_semantics=("parallel",),
    vmem_limit_bytes=48 * 1024 * 1024,
)


def _blur_kron(xf, bh, bw, dtype):
    """Fused single-matmul path for small images. xf: (n_imgs, H*W)."""
    n_imgs, HW = xf.shape
    Ho, Wo = bh.shape[0], bw.shape[0]
    OW = Ho * Wo
    OWp = _round_up(OW, 128)                           # lane-dense output stores
    m = np.ascontiguousarray(np.kron(bh, bw).T)        # (H*W, Ho*Wo), exact
    if OWp != OW:
        m = np.pad(m, ((0, 0), (0, OWp - OW)))
    m = jnp.asarray(m, dtype=dtype)                    # keep bf16 inputs on bf16 MXU

    itemsize = jnp.dtype(dtype).itemsize
    per_img = itemsize * (HW + OWp) * 2 + 4 * OWp      # dbl-buffered IO + f32 acc
    fixed = itemsize * HW * OWp * 2                    # operator matrix (conservative)
    b_blk, b_pad = _pick_batch_block(n_imgs, per_img, fixed)

    if b_pad != n_imgs:
        xf = jnp.pad(xf, ((0, b_pad - n_imgs), (0, 0)))

    out = pl.pallas_call(
        _kron_blur_kernel,
        out_shape=jax.ShapeDtypeStruct((b_pad, OWp), dtype),
        grid=(b_pad // b_blk,),
        in_specs=[
            pl.BlockSpec((HW, OWp), lambda g: (0, 0)),        # constant operator
            pl.BlockSpec((b_blk, HW), lambda g: (g, 0)),      # image batch block
        ],
        out_specs=pl.BlockSpec((b_blk, OWp), lambda g: (g, 0)),
        compiler_params=_COMPILER_PARAMS,
    )(m, xf)
    return out[:n_imgs, :OW], Ho, Wo


def _blur_separable(xr, bh, bw, dtype):
    """Two-matmul separable path for larger images. xr: (n_imgs, H, W)."""
    n_imgs, H, W = xr.shape
    Ho, Wo = bh.shape[0], bw.shape[0]
    bwt = np.ascontiguousarray(bw.T)                   # (W, Wo)
    bh_j = jnp.asarray(bh, dtype=dtype)
    bwt_j = jnp.asarray(bwt, dtype=dtype)

    itemsize = jnp.dtype(dtype).itemsize
    per_img = (itemsize * (H * W + Ho * Wo) * 2        # double-buffered IO blocks
               + 4 * (H * Wo + Ho * Wo)                # f32 matmul intermediates
               + itemsize * (H * Wo + Ho * H))         # cast t + broadcast Bh
    fixed = itemsize * (Ho * H + W * Wo) * 2
    b_blk, b_pad = _pick_batch_block(n_imgs, per_img, fixed)

    if b_pad != n_imgs:
        xr = jnp.pad(xr, ((0, b_pad - n_imgs), (0, 0), (0, 0)))

    out = pl.pallas_call(
        _sep_blur_kernel,
        out_shape=jax.ShapeDtypeStruct((b_pad, Ho, Wo), dtype),
        grid=(b_pad // b_blk,),
        in_specs=[
            pl.BlockSpec((Ho, H), lambda g: (0, 0)),
            pl.BlockSpec((W, Wo), lambda g: (0, 0)),
            pl.BlockSpec((b_blk, H, W), lambda g: (g, 0, 0)),
        ],
        out_specs=pl.BlockSpec((b_blk, Ho, Wo), lambda g: (g, 0, 0)),
        compiler_params=_COMPILER_PARAMS,
    )(bh_j, bwt_j, xr)
    return out[:n_imgs], Ho, Wo


def make_gaussian_blur(blur_std: float):
    """Returns (apply, f, pad, kw); apply(x:(N,C,H,W)) matches GaussianBlur(blur_std).forward."""
    # Same kw selection as the PyTorch module (kept verbatim for parity).
    kw_tmp = int(2 * 4 * blur_std)
    kw = max(kw_tmp + 1 if kw_tmp % 2 == 1 else 0, 3)
    f = _gauss_kernel_1d(kw, blur_std)
    pad = kw // 2

    @jax.jit
    def apply(x):
        N, C, H, W = x.shape
        dtype = x.dtype
        n_imgs = N * C
        bh = _banded_blur_matrix(H, kw, pad, f)        # (Ho, H)
        bw = _banded_blur_matrix(W, kw, pad, f)        # (Wo, W)
        Ho, Wo = bh.shape[0], bw.shape[0]

        if (H * W) * (Ho * Wo) <= _KRON_MAX_ELEMS:
            out, Ho, Wo = _blur_kron(x.reshape(n_imgs, H * W), bh, bw, dtype)
        else:
            out, Ho, Wo = _blur_separable(x.reshape(n_imgs, H, W), bh, bw, dtype)
        return out.reshape(N, C, Ho, Wo)

    return apply, f, pad, kw


# ---------------------------------------------------------------------------
# Reference + test.
# ---------------------------------------------------------------------------

def _reference(x, f, pad, kw):
    """Plain-JAX replica of the PyTorch forward (replicate pad + 2 correlations)."""
    N, C, H, W = x.shape
    xr = x.reshape(N * C, H, W)
    xp = jnp.pad(xr, ((0, 0), (pad, pad), (pad, pad)), mode="edge")
    Ho = H + 2 * pad - kw + 1
    Wo = W + 2 * pad - kw + 1
    tmp = sum(f[k] * xp[:, k:k + Ho, :] for k in range(kw))
    out = sum(f[k] * tmp[:, :, k:k + Wo] for k in range(kw))
    return out.reshape(N, C, Ho, Wo)


if __name__ == "__main__":
    blur_std = 0.3   # -> kw = 3, pad = 1 (odd-kw path: output shape == input shape)
    blur_fn, f, pad, kw = make_gaussian_blur(blur_std)

    key = jax.random.PRNGKey(0)
    x = jax.random.normal(key, (2, 4, 16, 16), dtype=jnp.float32)

    y = jax.block_until_ready(blur_fn(x))
    y_ref = jax.block_until_ready(_reference(x, f, pad, kw))

    assert y.shape == y_ref.shape == (2, 4, 16, 16)
    assert jnp.allclose(y, y_ref, atol=1e-4, rtol=1e-4), float(jnp.max(jnp.abs(y - y_ref)))
    print("KERNEL_OK")
</pallas_src>

<mosaic_0001>
module attributes {stable_mosaic.version = 11 : i64} {
  func.func @_kron_blur_kernel(%arg0: i32, %arg1: memref<256x256xf32, #tpu.memory_space<vmem>>, %arg2: memref<8x256xf32, #tpu.memory_space<vmem>>, %arg3: memref<8x256xf32, #tpu.memory_space<vmem>>) attributes {dimension_semantics = [#tpu.dimension_semantics<parallel>], iteration_bounds = array<i64: 1>, scalar_prefetch = 0 : i64, scratch_operands = 0 : i64, tpu.core_type = #tpu.core_type<tc>, window_params = [{pipeline_mode = #tpu.pipeline_mode<synchronous>, transform_indices = @transform_0, window_bounds = array<i64: 256, 256>}, {transform_indices = @transform_1, window_bounds = array<i64: 8, 256>}, {transform_indices = @transform_2, window_bounds = array<i64: 8, 256>}]} {
    %c0 = arith.constant 0 : index
    %c0_0 = arith.constant 0 : index
    %0 = vector.load %arg2[%c0, %c0_0] : memref<8x256xf32, #tpu.memory_space<vmem>>, vector<8x256xf32>
    %c0_1 = arith.constant 0 : index
    %c0_2 = arith.constant 0 : index
    %1 = vector.load %arg1[%c0_1, %c0_2] : memref<256x256xf32, #tpu.memory_space<vmem>>, vector<256x256xf32>
    %cst = arith.constant dense<0.000000e+00> : vector<8x256xf32>
    %2 = tpu.matmul %0, %1, %cst {dimension_numbers = #tpu.dot_dimension_numbers<[1], [0], [0], [1], [0, 0, 1, 1], [], []>} : vector<8x256xf32>, vector<256x256xf32>, vector<8x256xf32> -> vector<8x256xf32>
    %c0_3 = arith.constant 0 : index
    %c0_4 = arith.constant 0 : index
    %3 = vector.load %arg3[%c0_3, %c0_4] : memref<8x256xf32, #tpu.memory_space<vmem>>, vector<8x256xf32>
    tpu.vector_store %arg3[%c0_3, %c0_4], %2 {strides = array<i32>} : memref<8x256xf32, #tpu.memory_space<vmem>>, vector<8x256xf32>,
    return
  }
  func.func @transform_0(%arg0: i32) -> (i32, i32) {
    %c0_i32 = arith.constant 0 : i32
    %c0_i32_0 = arith.constant 0 : i32
    %c0_i32_1 = arith.constant 0 : i32
    return %c0_i32, %c0_i32_0 : i32, i32
  }
  func.func @transform_1(%arg0: i32) -> (i32, i32) {
    %c0_i32 = arith.constant 0 : i32
    %c0_i32_0 = arith.constant 0 : i32
    return %arg0, %c0_i32 : i32, i32
  }
  func.func @transform_2(%arg0: i32) -> (i32, i32) {
    %c0_i32 = arith.constant 0 : i32
    %c0_i32_0 = arith.constant 0 : i32
    return %arg0, %c0_i32 : i32, i32
  }
}

</mosaic_0001>

<llo_original>
// kernel: apply.1
$region0: #{apply.1}
  #allocation0 [shape = 'u32[]', space=smem, size = 0x4, offset = 0x4, fixed_abs, tag = 'smem constant byte address 0x4 - core index']
  #allocation1 [shape = 'u32[72,128]{1,0:T(1,128)}', space=vmem, size = 0x9000, scoped, tag = 'internal scratch']
  %s0 = inlined_call_operand.hbm [shape: f32[256,256], index: 0, kind: input, shape index: {}]
  %s1 = inlined_call_operand.vmem [shape: f32[8,256], index: 1, kind: input, shape index: {}]
  %s2 = inlined_call_operand.vmem [shape: f32[8,256], index: 2, kind: output, shape index: {}]
  %s3 = sld [smem:[#allocation0]]
  $region22: #{apply.1} parent=0
    _
  %s5 = ssub.s32 1, %s3
  %s6 = scalar_select 0, %s5, %s3
  $region1: #{apply.1} parent=0
    #allocation2 [shape = 'u8[262144]{0}', space=vmem, size = 0x40000, scoped, tag = 'input window, operand 0, single buffered']
    #allocation3 [shape = 's32[1]{0}', space=sflag, size = 0x4, scoped, tag = 'scoped memory for apply.1']
    %7 = vsyncpa [#allocation3], 0
    // Predicated region
    $region2: #{apply.1} parent=1 // pred_check
      _
    $region3: #{apply.1} parent=1 // pred_check_branch
      %9 = sbr.rel (0) target = $region5
    $region4: #{apply.1} parent=1 // pred_region
      %11 = vsyncadd [#allocation3], 0
      %s12 = sshll.u32 %s0, 4
      %s13 = int_to_ptr.hbm [resolvable:$true] %s12
      %s14 = sshll.u32 [#allocation2], 4
      %s15 = int_to_ptr.vmem [resolvable:$true] %s14
      %20 = dma.hbm_to_vmem [thread:$0]  %s13, 8192, %s15, [#allocation3], 256, 256, 16
    $region5: #{apply.1} parent=1 // pred_fallthru
      _
    // Predicated region
    $region6: #{apply.1} parent=1 // pred_check
      _
    $region7: #{apply.1} parent=1 // pred_check_branch
      %22 = sbr.rel (0) target = $region9
    $region8: #{apply.1} parent=1 // pred_region
      _
    $region9: #{apply.1} parent=1 // pred_fallthru
      _
    // Predicated region
    $region10: #{apply.1} parent=1 // pred_check
      _
    $region11: #{apply.1} parent=1 // pred_check_branch
      %24 = sbr.rel (0) target = $region13
    $region12: #{apply.1} parent=1 // pred_region
      %26 = dma.done [#allocation3], 8192
    $region13: #{apply.1} parent=1 // pred_fallthru
      _
    %v27 = vld [vmem:[%s1] sm:$0xff]
    %v28 = vld [vmem:[%s1 + $0x8] sm:$0xff]
    %v29 = vld [vmem:[#allocation2] sm:$0xff]
    %v30 = vld [vmem:[#allocation2 + $0x8] sm:$0xff]
    %v31 = vld [vmem:[#allocation2 + $0x10] sm:$0xff]
    %v32 = vld [vmem:[#allocation2 + $0x18] sm:$0xff]
    %v33 = vld [vmem:[#allocation2 + $0x20] sm:$0xff]
    %v34 = vld [vmem:[#allocation2 + $0x28] sm:$0xff]
    %v35 = vld [vmem:[#allocation2 + $0x30] sm:$0xff]
    %v36 = vld [vmem:[#allocation2 + $0x38] sm:$0xff]
    %v37 = vld [vmem:[#allocation2 + $0x40] sm:$0xff]
    %v38 = vld [vmem:[#allocation2 + $0x48] sm:$0xff]
    %v39 = vld [vmem:[#allocation2 + $0x50] sm:$0xff]
    %v40 = vld [vmem:[#allocation2 + $0x58] sm:$0xff]
    %v41 = vld [vmem:[#allocation2 + $0x60] sm:$0xff]
    %v42 = vld [vmem:[#allocation2 + $0x68] sm:$0xff]
    %v43 = vld [vmem:[#allocation2 + $0x70] sm:$0xff]
    %v44 = vld [vmem:[#allocation2 + $0x78] sm:$0xff]
    %v45 = vld [vmem:[#allocation2 + $0x80] sm:$0xff]
    %v46 = vld [vmem:[#allocation2 + $0x88] sm:$0xff]
    %v47 = vld [vmem:[#allocation2 + $0x90] sm:$0xff]
    %v48 = vld [vmem:[#allocation2 + $0x98] sm:$0xff]
    %v49 = vld [vmem:[#allocation2 + $0xa0] sm:$0xff]
    %v50 = vld [vmem:[#allocation2 + $0xa8] sm:$0xff]
    %v51 = vld [vmem:[#allocation2 + $0xb0] sm:$0xff]
    %v52 = vld [vmem:[#allocation2 + $0xb8] sm:$0xff]
    %v53 = vld [vmem:[#allocation2 + $0xc0] sm:$0xff]
    %v54 = vld [vmem:[#allocation2 + $0xc8] sm:$0xff]
    %v55 = vld [vmem:[#allocation2 + $0xd0] sm:$0xff]
    %v56 = vld [vmem:[#allocation2 + $0xd8] sm:$0xff]
    %v57 = vld [vmem:[#allocation2 + $0xe0] sm:$0xff]
    %v58 = vld [vmem:[#allocation2 + $0xe8] sm:$0xff]
    %v59 = vld [vmem:[#allocation2 + $0xf0] sm:$0xff]
    %v60 = vld [vmem:[#allocation2 + $0xf8] sm:$0xff]
    %v61 = vld [vmem:[#allocation2 + $0x100] sm:$0xff]
    %v62 = vld [vmem:[#allocation2 + $0x108] sm:$0xff]
    %v63 = vld [vmem:[#allocation2 + $0x110] sm:$0xff]
    %v64 = vld [vmem:[#allocation2 + $0x118] sm:$0xff]
    %v65 = vld [vmem:[#allocation2 + $0x120] sm:$0xff]
    %v66 = vld [vmem:[#allocation2 + $0x128] sm:$0xff]
    %v67 = vld [vmem:[#allocation2 + $0x130] sm:$0xff]
    %v68 = vld [vmem:[#allocation2 + $0x138] sm:$0xff]
    %v69 = vld [vmem:[#allocation2 + $0x140] sm:$0xff]
    %v70 = vld [vmem:[#allocation2 + $0x148] sm:$0xff]
    %v71 = vld [vmem:[#allocation2 + $0x150] sm:$0xff]
    %v72 = vld [vmem:[#allocation2 + $0x158] sm:$0xff]
    %v73 = vld [vmem:[#allocation2 + $0x160] sm:$0xff]
    %v74 = vld [vmem:[#allocation2 + $0x168] sm:$0xff]
    %v75 = vld [vmem:[#allocation2 + $0x170] sm:$0xff]
    %v76 = vld [vmem:[#allocation2 + $0x178] sm:$0xff]
    %v77 = vld [vmem:[#allocation2 + $0x180] sm:$0xff]
    %v78 = vld [vmem:[#allocation2 + $0x188] sm:$0xff]
    %v79 = vld [vmem:[#allocation2 + $0x190] sm:$0xff]
    %v80 = vld [vmem:[#allocation2 + $0x198] sm:$0xff]
    %v81 = vld [vmem:[#allocation2 + $0x1a0] sm:$0xff]
    %v82 = vld [vmem:[#allocation2 + $0x1a8] sm:$0xff]
    %v83 = vld [vmem:[#allocation2 + $0x1b0] sm:$0xff]
    %v84 = vld [vmem:[#allocation2 + $0x1b8] sm:$0xff]
    %v85 = vld [vmem:[#allocation2 + $0x1c0] sm:$0xff]
    %v86 = vld [vmem:[#allocation2 + $0x1c8] sm:$0xff]
    %v87 = vld [vmem:[#allocation2 + $0x1d0] sm:$0xff]
    %v88 = vld [vmem:[#allocation2 + $0x1d8] sm:$0xff]
    %v89 = vld [vmem:[#allocation2 + $0x1e0] sm:$0xff]
    %v90 = vld [vmem:[#allocation2 + $0x1e8] sm:$0xff]
    %v91 = vld [vmem:[#allocation2 + $0x1f0] sm:$0xff]
    %v92 = vld [vmem:[#allocation2 + $0x1f8] sm:$0xff]
    %93 = vmatpush.msra.mxu0 %v59
    %94 = vmatpush.msra.mxu0 %v57
    %95 = vmatpush.msra.mxu0 %v55
    %96 = vmatpush.msra.mxu0 %v53
    %97 = vmatpush.msra.mxu0 %v51
    %98 = vmatpush.msra.mxu0 %v49
    %99 = vmatpush.msra.mxu0 %v47
    %100 = vmatpush.msra.mxu0 %v45
    %101 = vmatpush.msra.mxu0 %v43
    %102 = vmatpush.msra.mxu0 %v41
    %103 = vmatpush.msra.mxu0 %v39
    %104 = vmatpush.msra.mxu0 %v37
    %105 = vmatpush.msra.mxu0 %v35
    %106 = vmatpush.msra.mxu0 %v33
    %107 = vmatpush.msra.mxu0 %v31
    %108 = vmatpush.msra.mxu0 %v29
    %109 = vmatmul.f32.gmra.mxu0 %v27
    %v110 = vpop.f32.mrf.mxu0
    %v111 = vadd.f32 0.0, %v110
    %112 = vdwg.mxu0
    %113 = vmatpush.msra.mxu0 %v91
    %114 = vmatpush.msra.mxu0 %v89
    %115 = vmatpush.msra.mxu0 %v87
    %116 = vmatpush.msra.mxu0 %v85
    %117 = vmatpush.msra.mxu0 %v83
    %118 = vmatpush.msra.mxu0 %v81
    %119 = vmatpush.msra.mxu0 %v79
    %120 = vmatpush.msra.mxu0 %v77
    %121 = vmatpush.msra.mxu0 %v75
    %122 = vmatpush.msra.mxu0 %v73
    %123 = vmatpush.msra.mxu0 %v71
    %124 = vmatpush.msra.mxu0 %v69
    %125 = vmatpush.msra.mxu0 %v67
    %126 = vmatpush.msra.mxu0 %v65
    %127 = vmatpush.msra.mxu0 %v63
    %128 = vmatpush.msra.mxu0 %v61
    %129 = vmatmul.f32.gmra.mxu0 %v28
    %v130 = vpop.f32.mrf.mxu0
    %v131 = vadd.f32 %v111, %v130
    %132 = vdwg.mxu0
    %133 = vmatpush.msra.mxu0 %v60
    %134 = vmatpush.msra.mxu0 %v58
    %135 = vmatpush.msra.mxu0 %v56
    %136 = vmatpush.msra.mxu0 %v54
    %137 = vmatpush.msra.mxu0 %v52
    %138 = vmatpush.msra.mxu0 %v50
    %139 = vmatpush.msra.mxu0 %v48
    %140 = vmatpush.msra.mxu0 %v46
    %141 = vmatpush.msra.mxu0 %v44
    %142 = vmatpush.msra.mxu0 %v42
    %143 = vmatpush.msra.mxu0 %v40
    %144 = vmatpush.msra.mxu0 %v38
    %145 = vmatpush.msra.mxu0 %v36
    %146 = vmatpush.msra.mxu0 %v34
    %147 = vmatpush.msra.mxu0 %v32
    %148 = vmatpush.msra.mxu0 %v30
    %149 = vmatmul.f32.gmra.mxu0 %v27
    %v150 = vpop.f32.mrf.mxu0
    %v151 = vadd.f32 0.0, %v150
    %152 = vdwg.mxu0
    %153 = vmatpush.msra.mxu0 %v92
    %154 = vmatpush.msra.mxu0 %v90
    %155 = vmatpush.msra.mxu0 %v88
    %156 = vmatpush.msra.mxu0 %v86
    %157 = vmatpush.msra.mxu0 %v84
    %158 = vmatpush.msra.mxu0 %v82
    %159 = vmatpush.msra.mxu0 %v80
    %160 = vmatpush.msra.mxu0 %v78
    %161 = vmatpush.msra.mxu0 %v76
    %162 = vmatpush.msra.mxu0 %v74
    %163 = vmatpush.msra.mxu0 %v72
    %164 = vmatpush.msra.mxu0 %v70
    %165 = vmatpush.msra.mxu0 %v68
    %166 = vmatpush.msra.mxu0 %v66
    %167 = vmatpush.msra.mxu0 %v64
    %168 = vmatpush.msra.mxu0 %v62
    %169 = vmatmul.f32.gmra.mxu0 %v28
    %v170 = vpop.f32.mrf.mxu0
    %v171 = vadd.f32 %v151, %v170
    %172 = vdwg.mxu0
    %173 = vst [vmem:[%s2] sm:$0xff] %v131
    %174 = vst [vmem:[%s2 + $0x8] sm:$0xff] %v171
    // Predicated region
    $region14: #{apply.1} parent=1 // pred_check
      _
    $region15: #{apply.1} parent=1 // pred_check_branch
      %176 = sbr.rel (0) target = $region17
    $region16: #{apply.1} parent=1 // pred_region
      _
    $region17: #{apply.1} parent=1 // pred_fallthru
      _
    // Predicated region
    $region18: #{apply.1} parent=1 // pred_check
      _
    $region19: #{apply.1} parent=1 // pred_check_branch
      %178 = sbr.rel (0) target = $region21
    $region20: #{apply.1} parent=1 // pred_region
      _
    $region21: #{apply.1} parent=1 // pred_fallthru
      _
    %179 = vsyncpa [#allocation3], 1

</llo_original>
